<compile_context>
chip_gen: v7x
topology: tpu7x:2x2x1
jax: 0.10.0
libtpu: 0.0.40
codegen_flags: <defaults>
</compile_context>

<pallas_src>
import functools
import math

import jax
import jax.numpy as jnp
from jax.experimental import pallas as pl
from jax.experimental.pallas import tpu as pltpu


# ---------------------------------------------------------------------------
# Fused DecoderBlock kernel
# ---------------------------------------------------------------------------
def _decoder_block_kernel(emb_ref, x_ref, w_ada_ref, b_ada_ref, wk_ref,
                          w1_ref, b1_ref, w2_ref, b2_ref, g_ref, bb_ref,
                          o_ref, t_ref, *, B, N, E, degree, eps, mxu_dtype):
    f32 = jnp.float32

    # ---- timestep conditioning: (scale, shift) = Linear(SiLU(emb)) --------
    emb = emb_ref[...].astype(f32)                                    # (B, E)
    se = emb * jax.nn.sigmoid(emb)                                    # SiLU
    cond = jnp.dot(se.astype(mxu_dtype), w_ada_ref[...],
                   preferred_element_type=f32) + b_ada_ref[...]       # (B, 2E)
    scale = cond[:, :E]                                               # (B, E)
    shift = cond[:, E:]                                               # (B, E)
    scale_r = jnp.broadcast_to(scale[:, None, :], (B, N, E)).reshape(B * N, E)
    shift_r = jnp.broadcast_to(shift[:, None, :], (B, N, E)).reshape(B * N, E)

    # ---- AdaLayerNorm (elementwise_affine=False) over the emb dim ---------
    x = x_ref[...].astype(f32)                                        # (B*N, E)
    mu = jnp.mean(x, axis=-1, keepdims=True)
    xc = x - mu
    var = jnp.mean(xc * xc, axis=-1, keepdims=True)
    xln = xc * jax.lax.rsqrt(var + eps) * (1.0 + scale_r) + shift_r   # (M, E)

    # ---- ChebyKAN over the channel dim; whole batch in one contraction ----
    # Fold the batch into the lane axis: xt[n, b*E + e] = xln[b*N + n, e].
    xt = jnp.concatenate([xln[b * N:(b + 1) * N, :] for b in range(B)], axis=1)
    t = jnp.tanh(xt)                                                  # (N, B*E)
    # Chebyshev recurrence T_{d+1} = 2 t T_d - T_{d-1}; each term is written
    # directly into the ((D+1)*N, B*E) VMEM scratch slab (d-major rows).
    t_ref[0:N, :] = jnp.ones_like(t).astype(t_ref.dtype)
    if degree >= 1:
        t_ref[N:2 * N, :] = t.astype(t_ref.dtype)
    t_prev, t_cur = jnp.ones_like(t), t
    for d in range(2, degree + 1):
        t_nxt = 2.0 * t * t_cur - t_prev
        t_ref[d * N:(d + 1) * N, :] = t_nxt.astype(t_ref.dtype)
        t_prev, t_cur = t_cur, t_nxt
    # Single folded MXU matmul: (N_out, K) @ (K, B*E) -> (N_out, B*E).
    y = jnp.dot(wk_ref[...], t_ref[...], preferred_element_type=f32)
    # Back to (B*N, E) rows; res2 = ChebyKAN(xln) + xln  (needs N_out == N_in).
    kan = jnp.concatenate([y[:, b * E:(b + 1) * E] for b in range(B)], axis=0)
    r2 = kan + xln                                                    # (M, E)

    # ---- FFN (linear1 -> SiLU -> linear2) + residual + LayerNorm ----------
    h = jnp.dot(r2.astype(mxu_dtype), w1_ref[...],
                preferred_element_type=f32) + b1_ref[...]             # (M, H)
    h = h * jax.nn.sigmoid(h)                                         # SiLU
    # TODO(synk): dropout omitted (inference mode -> identity).
    y2 = jnp.dot(h.astype(mxu_dtype), w2_ref[...],
                 preferred_element_type=f32) + b2_ref[...]            # (M, E)
    y2 = y2 + r2
    mu2 = jnp.mean(y2, axis=-1, keepdims=True)
    yc = y2 - mu2
    var2 = jnp.mean(yc * yc, axis=-1, keepdims=True)
    out = yc * jax.lax.rsqrt(var2 + eps) * g_ref[...] + bb_ref[...]
    o_ref[...] = out.astype(o_ref.dtype)


# ---------------------------------------------------------------------------
# Wrapper
# ---------------------------------------------------------------------------
def _sinusoidal_emb(timestep, dim):
    half = dim // 2
    freqs = jnp.exp(jnp.arange(half, dtype=jnp.float32)
                    * (-math.log(10000.0) / (half - 1)))
    emb = timestep.astype(jnp.float32)[:, None] * freqs[None, :]
    return jnp.concatenate([jnp.sin(emb), jnp.cos(emb)], axis=-1)     # (B, dim)


def decoder_block(x, timestep, params, *, eps=1e-5, mxu_dtype=jnp.float32,
                  label_emb=None):
    """x: (B, n_channel, emb_dim); timestep: (B,). Returns (B, n_channel, emb_dim)."""
    B, N, E = x.shape
    coeffs = params["cheby"]
    n_in, n_out, dp1 = coeffs.shape
    assert n_in == N and n_out == N, "DecoderBlock uses ChebyKANLayer(n_channel, n_channel)"
    degree = dp1 - 1
    K = dp1 * N
    H = params["w1"].shape[1]
    M = B * N

    # Tiny conditioning input (pure elementwise); the SiLU+Linear live in-kernel.
    emb = _sinusoidal_emb(timestep, E)
    if label_emb is not None:
        emb = emb + label_emb

    # ChebyKAN weight folded for the single contraction: wk[o, d*N + i] = coeffs[i, o, d].
    wk = jnp.transpose(coeffs, (1, 2, 0)).reshape(n_out, K).astype(mxu_dtype)

    x2d = x.reshape(M, E).astype(jnp.float32)
    w_ada = params["w_ada"].astype(mxu_dtype)
    w1 = params["w1"].astype(mxu_dtype)
    w2 = params["w2"].astype(mxu_dtype)
    b_ada = params["b_ada"].reshape(1, 2 * E).astype(jnp.float32)
    b1 = params["b1"].reshape(1, H).astype(jnp.float32)
    b2 = params["b2"].reshape(1, E).astype(jnp.float32)
    gamma = params["gamma"].reshape(1, E).astype(jnp.float32)
    beta = params["beta"].reshape(1, E).astype(jnp.float32)

    itemsize = jnp.dtype(mxu_dtype).itemsize
    flops = (2 * B * E * 2 * E                 # conditioning linear
             + 2 * N * K * B * E               # folded Chebyshev contraction
             + 2 * M * E * H + 2 * M * H * E   # FFN
             + 20 * M * E)                     # LN / residual / recurrence (approx)
    transcendentals = B * E + M * E + M * H + 4 * M
    bytes_accessed = (4 * (B * E + 2 * M * E + 2 * E + H + 3 * E)
                      + itemsize * (E * 2 * E + N * K + E * H + H * E))

    kernel = functools.partial(_decoder_block_kernel, B=B, N=N, E=E,
                               degree=degree, eps=eps, mxu_dtype=mxu_dtype)
    out2d = pl.pallas_call(
        kernel,
        out_shape=jax.ShapeDtypeStruct((M, E), jnp.float32),
        scratch_shapes=[pltpu.VMEM((K, B * E), mxu_dtype)],
        cost_estimate=pl.CostEstimate(flops=flops,
                                      transcendentals=transcendentals,
                                      bytes_accessed=bytes_accessed),
    )(emb, x2d, w_ada, b_ada, wk, w1, b1, w2, b2, gamma, beta)
    return out2d.reshape(B, N, E)


# ---------------------------------------------------------------------------
# Pure-JAX reference (mirrors the PyTorch forward, incl. the permute pair and
# the cos(d * arccos(tanh(x))) ChebyKAN formulation).
# ---------------------------------------------------------------------------
def decoder_block_reference(x, timestep, params, *, eps=1e-5):
    B, N, E = x.shape
    hi = jax.lax.Precision.HIGHEST
    emb = _sinusoidal_emb(timestep, E)
    cond = jnp.dot(jax.nn.silu(emb), params["w_ada"], precision=hi) + params["b_ada"]
    scale, shift = cond[:, None, :E], cond[:, None, E:]

    mu = x.mean(-1, keepdims=True)
    var = ((x - mu) ** 2).mean(-1, keepdims=True)
    xln = (x - mu) / jnp.sqrt(var + eps) * (1.0 + scale) + shift
    res1 = xln

    coeffs = params["cheby"]
    dp1 = coeffs.shape[-1]
    xp = jnp.transpose(xln, (0, 2, 1)).reshape(B * E, N)
    t = jnp.tanh(xp)
    theta = jnp.arccos(t)
    d = jnp.arange(dp1, dtype=jnp.float32)
    T = jnp.cos(theta[:, :, None] * d[None, None, :])                  # (BE, N, D+1)
    y = jnp.einsum("bid,iod->bo", T, coeffs, precision=hi)             # (BE, N)
    kan = jnp.transpose(y.reshape(B, E, N), (0, 2, 1))
    res2 = kan + res1

    h = jax.nn.silu(jnp.dot(res2, params["w1"], precision=hi) + params["b1"])
    y = jnp.dot(h, params["w2"], precision=hi) + params["b2"] + res2
    mu = y.mean(-1, keepdims=True)
    var = ((y - mu) ** 2).mean(-1, keepdims=True)
    return (y - mu) / jnp.sqrt(var + eps) * params["gamma"] + params["beta"]


if __name__ == "__main__":
    # Small, deterministic config matching the module defaults (emb_dim=96, order=4).
    B, n_channel, emb_dim, order = 2, 8, 96, 4

    key = jax.random.PRNGKey(0)
    ks = jax.random.split(key, 8)
    x = jax.random.normal(ks[0], (B, n_channel, emb_dim), dtype=jnp.float32)
    timestep = jnp.array([3, 17], dtype=jnp.int32)

    params = dict(
        w_ada=0.02 * jax.random.normal(ks[1], (emb_dim, 2 * emb_dim), jnp.float32),
        b_ada=jnp.zeros((2 * emb_dim,), jnp.float32),
        # nn.init.normal_(cheby_coeffs, mean=0, std=1/(in_features*(order+1)))
        cheby=(1.0 / (n_channel * (order + 1))) * jax.random.normal(
            ks[2], (n_channel, n_channel, order + 1), jnp.float32),
        w1=0.05 * jax.random.normal(ks[3], (emb_dim, 4 * emb_dim), jnp.float32),
        b1=0.01 * jax.random.normal(ks[4], (4 * emb_dim,), jnp.float32),
        w2=0.05 * jax.random.normal(ks[5], (4 * emb_dim, emb_dim), jnp.float32),
        b2=0.01 * jax.random.normal(ks[6], (emb_dim,), jnp.float32),
        gamma=jnp.ones((emb_dim,), jnp.float32),
        beta=jnp.zeros((emb_dim,), jnp.float32),
    )

    ref = decoder_block_reference(x, timestep, params)

    # f32 MXU-operand path: strict check against the reference.
    out = jax.block_until_ready(decoder_block(x, timestep, params))
    assert out.shape == (B, n_channel, emb_dim)
    max_err = float(jnp.max(jnp.abs(out - ref)))
    assert jnp.allclose(out, ref, atol=1e-3, rtol=1e-3), f"f32 mismatch vs reference: {max_err}"

    # bf16 MXU-operand path (v5e/v6e/v7x throughput knob; f32 accumulation) —
    # looser tolerance, per the review's bf16 correctness note.
    out_bf = jax.block_until_ready(
        decoder_block(x, timestep, params, mxu_dtype=jnp.bfloat16))
    max_err_bf = float(jnp.max(jnp.abs(out_bf - ref)))
    assert jnp.allclose(out_bf, ref, atol=1e-1, rtol=1e-1), f"bf16 mismatch vs reference: {max_err_bf}"

    print("KERNEL_OK")
</pallas_src>

<mosaic_0001>
module attributes {stable_mosaic.version = 11 : i64} {
  func.func @_decoder_block_kernel(%arg0: memref<2x96xf32, #tpu.memory_space<vmem>>, %arg1: memref<16x96xf32, #tpu.memory_space<vmem>>, %arg2: memref<96x192xf32, #tpu.memory_space<vmem>>, %arg3: memref<1x192xf32, #tpu.memory_space<vmem>>, %arg4: memref<8x40xf32, #tpu.memory_space<vmem>>, %arg5: memref<96x384xf32, #tpu.memory_space<vmem>>, %arg6: memref<1x384xf32, #tpu.memory_space<vmem>>, %arg7: memref<384x96xf32, #tpu.memory_space<vmem>>, %arg8: memref<1x96xf32, #tpu.memory_space<vmem>>, %arg9: memref<1x96xf32, #tpu.memory_space<vmem>>, %arg10: memref<1x96xf32, #tpu.memory_space<vmem>>, %arg11: memref<16x96xf32, #tpu.memory_space<vmem>>, %arg12: memref<40x192xf32, #tpu.memory_space<vmem>>) attributes {dimension_semantics = [], scalar_prefetch = 0 : i64, scratch_operands = 1 : i64, tpu.core_type = #tpu.core_type<tc>} {
    %c0 = arith.constant 0 : index
    %c0_0 = arith.constant 0 : index
    %0 = vector.load %arg0[%c0, %c0_0] : memref<2x96xf32, #tpu.memory_space<vmem>>, vector<2x96xf32>
    %1 = arith.negf %0 : vector<2x96xf32>
    %2 = math.exp %1 : vector<2x96xf32>
    %cst = arith.constant 1.000000e+00 : f32
    %3 = vector.broadcast %cst : f32 to vector<2x96xf32>
    %4 = arith.addf %3, %2 : vector<2x96xf32>
    %5 = arith.divf %3, %4 : vector<2x96xf32>
    %6 = arith.mulf %0, %5 : vector<2x96xf32>
    %c0_1 = arith.constant 0 : index
    %c0_2 = arith.constant 0 : index
    %7 = vector.load %arg2[%c0_1, %c0_2] : memref<96x192xf32, #tpu.memory_space<vmem>>, vector<96x192xf32>
    %cst_3 = arith.constant dense<0.000000e+00> : vector<2x192xf32>
    %8 = tpu.matmul %6, %7, %cst_3 {dimension_numbers = #tpu.dot_dimension_numbers<[1], [0], [0], [1], [0, 0, 1, 1], [], []>} : vector<2x96xf32>, vector<96x192xf32>, vector<2x192xf32> -> vector<2x192xf32>
    %c0_4 = arith.constant 0 : index
    %c0_5 = arith.constant 0 : index
    %9 = vector.load %arg3[%c0_4, %c0_5] : memref<1x192xf32, #tpu.memory_space<vmem>>, vector<1x192xf32>
    %10 = vector.broadcast %9 : vector<1x192xf32> to vector<2x192xf32>
    %11 = arith.addf %8, %10 : vector<2x192xf32>
    %12 = vector.extract_strided_slice %11 {offsets = [0, 0], sizes = [2, 96], strides = [1, 1]} : vector<2x192xf32> to vector<2x96xf32>
    %13 = vector.extract_strided_slice %11 {offsets = [0, 96], sizes = [2, 96], strides = [1, 1]} : vector<2x192xf32> to vector<2x96xf32>
    %14 = vector.shape_cast %12 : vector<2x96xf32> to vector<2x1x96xf32>
    %15 = vector.shape_cast %14 : vector<2x1x96xf32> to vector<2x1x96xf32>
    %16 = vector.broadcast %15 : vector<2x1x96xf32> to vector<2x8x96xf32>
    %17 = vector.shape_cast %16 : vector<2x8x96xf32> to vector<16x96xf32>
    %18 = vector.shape_cast %13 : vector<2x96xf32> to vector<2x1x96xf32>
    %19 = vector.shape_cast %18 : vector<2x1x96xf32> to vector<2x1x96xf32>
    %20 = vector.broadcast %19 : vector<2x1x96xf32> to vector<2x8x96xf32>
    %21 = vector.shape_cast %20 : vector<2x8x96xf32> to vector<16x96xf32>
    %c0_6 = arith.constant 0 : index
    %c0_7 = arith.constant 0 : index
    %22 = vector.load %arg1[%c0_6, %c0_7] : memref<16x96xf32, #tpu.memory_space<vmem>>, vector<16x96xf32>
    %cst_8 = arith.constant dense<0.000000e+00> : vector<16xf32>
    %23 = vector.multi_reduction <add>, %22, %cst_8 [1] : vector<16x96xf32> to vector<16xf32>
    %24 = vector.shape_cast %23 : vector<16xf32> to vector<16x1xf32>
    %cst_9 = arith.constant 9.600000e+01 : f32
    %25 = vector.broadcast %cst_9 : f32 to vector<16x1xf32>
    %26 = arith.divf %24, %25 : vector<16x1xf32>
    %27 = vector.broadcast %26 : vector<16x1xf32> to vector<16x96xf32>
    %28 = arith.subf %22, %27 : vector<16x96xf32>
    %29 = arith.mulf %28, %28 : vector<16x96xf32>
    %cst_10 = arith.constant dense<0.000000e+00> : vector<16xf32>
    %30 = vector.multi_reduction <add>, %29, %cst_10 [1] : vector<16x96xf32> to vector<16xf32>
    %31 = vector.shape_cast %30 : vector<16xf32> to vector<16x1xf32>
    %cst_11 = arith.constant 9.600000e+01 : f32
    %32 = vector.broadcast %cst_11 : f32 to vector<16x1xf32>
    %33 = arith.divf %31, %32 : vector<16x1xf32>
    %cst_12 = arith.constant 9.99999974E-6 : f32
    %34 = vector.broadcast %cst_12 : f32 to vector<16x1xf32>
    %35 = arith.addf %33, %34 : vector<16x1xf32>
    %36 = math.rsqrt %35 : vector<16x1xf32>
    %37 = vector.broadcast %36 : vector<16x1xf32> to vector<16x96xf32>
    %38 = arith.mulf %28, %37 : vector<16x96xf32>
    %cst_13 = arith.constant 1.000000e+00 : f32
    %39 = vector.broadcast %cst_13 : f32 to vector<16x96xf32>
    %40 = arith.addf %39, %17 : vector<16x96xf32>
    %41 = arith.mulf %38, %40 : vector<16x96xf32>
    %42 = arith.addf %41, %21 : vector<16x96xf32>
    %43 = vector.extract_strided_slice %42 {offsets = [0, 0], sizes = [8, 96], strides = [1, 1]} : vector<16x96xf32> to vector<8x96xf32>
    %44 = vector.extract_strided_slice %42 {offsets = [8, 0], sizes = [8, 96], strides = [1, 1]} : vector<16x96xf32> to vector<8x96xf32>
    %45 = tpu.concatenate %43, %44 in 1 : vector<8x96xf32>, vector<8x96xf32> -> vector<8x192xf32>
    %46 = math.tanh %45 : vector<8x192xf32>
    %cst_14 = arith.constant 1.000000e+00 : f32
    %47 = vector.broadcast %cst_14 : f32 to vector<8x192xf32>
    %c0_15 = arith.constant 0 : index
    %c0_16 = arith.constant 0 : index
    %48 = vector.load %arg12[%c0_15, %c0_16] : memref<40x192xf32, #tpu.memory_space<vmem>>, vector<8x192xf32>
    tpu.vector_store %arg12[%c0_15, %c0_16], %47 {strides = array<i32>} : memref<40x192xf32, #tpu.memory_space<vmem>>, vector<8x192xf32>,
    %c8 = arith.constant 8 : index
    %c0_17 = arith.constant 0 : index
    %49 = vector.load %arg12[%c8, %c0_17] : memref<40x192xf32, #tpu.memory_space<vmem>>, vector<8x192xf32>
    tpu.vector_store %arg12[%c8, %c0_17], %46 {strides = array<i32>} : memref<40x192xf32, #tpu.memory_space<vmem>>, vector<8x192xf32>,
    %cst_18 = arith.constant 1.000000e+00 : f32
    %50 = vector.broadcast %cst_18 : f32 to vector<8x192xf32>
    %cst_19 = arith.constant 2.000000e+00 : f32
    %51 = vector.broadcast %cst_19 : f32 to vector<8x192xf32>
    %52 = arith.mulf %51, %46 : vector<8x192xf32>
    %53 = arith.mulf %52, %46 : vector<8x192xf32>
    %54 = arith.subf %53, %50 : vector<8x192xf32>
    %c16 = arith.constant 16 : index
    %c0_20 = arith.constant 0 : index
    %55 = vector.load %arg12[%c16, %c0_20] : memref<40x192xf32, #tpu.memory_space<vmem>>, vector<8x192xf32>
    tpu.vector_store %arg12[%c16, %c0_20], %54 {strides = array<i32>} : memref<40x192xf32, #tpu.memory_space<vmem>>, vector<8x192xf32>,
    %cst_21 = arith.constant 2.000000e+00 : f32
    %56 = vector.broadcast %cst_21 : f32 to vector<8x192xf32>
    %57 = arith.mulf %56, %46 : vector<8x192xf32>
    %58 = arith.mulf %57, %54 : vector<8x192xf32>
    %59 = arith.subf %58, %46 : vector<8x192xf32>
    %c24 = arith.constant 24 : index
    %c0_22 = arith.constant 0 : index
    %60 = vector.load %arg12[%c24, %c0_22] : memref<40x192xf32, #tpu.memory_space<vmem>>, vector<8x192xf32>
    tpu.vector_store %arg12[%c24, %c0_22], %59 {strides = array<i32>} : memref<40x192xf32, #tpu.memory_space<vmem>>, vector<8x192xf32>,
    %cst_23 = arith.constant 2.000000e+00 : f32
    %61 = vector.broadcast %cst_23 : f32 to vector<8x192xf32>
    %62 = arith.mulf %61, %46 : vector<8x192xf32>
    %63 = arith.mulf %62, %59 : vector<8x192xf32>
    %64 = arith.subf %63, %54 : vector<8x192xf32>
    %c32 = arith.constant 32 : index
    %c0_24 = arith.constant 0 : index
    %65 = vector.load %arg12[%c32, %c0_24] : memref<40x192xf32, #tpu.memory_space<vmem>>, vector<8x192xf32>
    tpu.vector_store %arg12[%c32, %c0_24], %64 {strides = array<i32>} : memref<40x192xf32, #tpu.memory_space<vmem>>, vector<8x192xf32>,
    %c0_25 = arith.constant 0 : index
    %c0_26 = arith.constant 0 : index
    %66 = vector.load %arg4[%c0_25, %c0_26] : memref<8x40xf32, #tpu.memory_space<vmem>>, vector<8x40xf32>
    %c0_27 = arith.constant 0 : index
    %c0_28 = arith.constant 0 : index
    %67 = vector.load %arg12[%c0_27, %c0_28] : memref<40x192xf32, #tpu.memory_space<vmem>>, vector<40x192xf32>
    %cst_29 = arith.constant dense<0.000000e+00> : vector<8x192xf32>
    %68 = tpu.matmul %66, %67, %cst_29 {dimension_numbers = #tpu.dot_dimension_numbers<[1], [0], [0], [1], [0, 0, 1, 1], [], []>} : vector<8x40xf32>, vector<40x192xf32>, vector<8x192xf32> -> vector<8x192xf32>
    %69 = vector.extract_strided_slice %68 {offsets = [0, 0], sizes = [8, 96], strides = [1, 1]} : vector<8x192xf32> to vector<8x96xf32>
    %70 = vector.extract_strided_slice %68 {offsets = [0, 96], sizes = [8, 96], strides = [1, 1]} : vector<8x192xf32> to vector<8x96xf32>
    %71 = tpu.concatenate %69, %70 in 0 : vector<8x96xf32>, vector<8x96xf32> -> vector<16x96xf32>
    %72 = arith.addf %71, %42 : vector<16x96xf32>
    %c0_30 = arith.constant 0 : index
    %c0_31 = arith.constant 0 : index
    %73 = vector.load %arg5[%c0_30, %c0_31] : memref<96x384xf32, #tpu.memory_space<vmem>>, vector<96x384xf32>
    %cst_32 = arith.constant dense<0.000000e+00> : vector<16x384xf32>
    %74 = tpu.matmul %72, %73, %cst_32 {dimension_numbers = #tpu.dot_dimension_numbers<[1], [0], [0], [1], [0, 0, 1, 1], [], []>} : vector<16x96xf32>, vector<96x384xf32>, vector<16x384xf32> -> vector<16x384xf32>
    %c0_33 = arith.constant 0 : index
    %c0_34 = arith.constant 0 : index
    %75 = vector.load %arg6[%c0_33, %c0_34] : memref<1x384xf32, #tpu.memory_space<vmem>>, vector<1x384xf32>
    %76 = vector.broadcast %75 : vector<1x384xf32> to vector<16x384xf32>
    %77 = arith.addf %74, %76 : vector<16x384xf32>
    %78 = arith.negf %77 : vector<16x384xf32>
    %79 = math.exp %78 : vector<16x384xf32>
    %cst_35 = arith.constant 1.000000e+00 : f32
    %80 = vector.broadcast %cst_35 : f32 to vector<16x384xf32>
    %81 = arith.addf %80, %79 : vector<16x384xf32>
    %82 = arith.divf %80, %81 : vector<16x384xf32>
    %83 = arith.mulf %77, %82 : vector<16x384xf32>
    %c0_36 = arith.constant 0 : index
    %c0_37 = arith.constant 0 : index
    %84 = vector.load %arg7[%c0_36, %c0_37] : memref<384x96xf32, #tpu.memory_space<vmem>>, vector<384x96xf32>
    %cst_38 = arith.constant dense<0.000000e+00> : vector<16x96xf32>
    %85 = tpu.matmul %83, %84, %cst_38 {dimension_numbers = #tpu.dot_dimension_numbers<[1], [0], [0], [1], [0, 0, 1, 1], [], []>} : vector<16x384xf32>, vector<384x96xf32>, vector<16x96xf32> -> vector<16x96xf32>
    %c0_39 = arith.constant 0 : index
    %c0_40 = arith.constant 0 : index
    %86 = vector.load %arg8[%c0_39, %c0_40] : memref<1x96xf32, #tpu.memory_space<vmem>>, vector<1x96xf32>
    %87 = vector.broadcast %86 : vector<1x96xf32> to vector<16x96xf32>
    %88 = arith.addf %85, %87 : vector<16x96xf32>
    %89 = arith.addf %88, %72 : vector<16x96xf32>
    %cst_41 = arith.constant dense<0.000000e+00> : vector<16xf32>
    %90 = vector.multi_reduction <add>, %89, %cst_41 [1] : vector<16x96xf32> to vector<16xf32>
    %91 = vector.shape_cast %90 : vector<16xf32> to vector<16x1xf32>
    %cst_42 = arith.constant 9.600000e+01 : f32
    %92 = vector.broadcast %cst_42 : f32 to vector<16x1xf32>
    %93 = arith.divf %91, %92 : vector<16x1xf32>
    %94 = vector.broadcast %93 : vector<16x1xf32> to vector<16x96xf32>
    %95 = arith.subf %89, %94 : vector<16x96xf32>
    %96 = arith.mulf %95, %95 : vector<16x96xf32>
    %cst_43 = arith.constant dense<0.000000e+00> : vector<16xf32>
    %97 = vector.multi_reduction <add>, %96, %cst_43 [1] : vector<16x96xf32> to vector<16xf32>
    %98 = vector.shape_cast %97 : vector<16xf32> to vector<16x1xf32>
    %cst_44 = arith.constant 9.600000e+01 : f32
    %99 = vector.broadcast %cst_44 : f32 to vector<16x1xf32>
    %100 = arith.divf %98, %99 : vector<16x1xf32>
    %cst_45 = arith.constant 9.99999974E-6 : f32
    %101 = vector.broadcast %cst_45 : f32 to vector<16x1xf32>
    %102 = arith.addf %100, %101 : vector<16x1xf32>
    %103 = math.rsqrt %102 : vector<16x1xf32>
    %104 = vector.broadcast %103 : vector<16x1xf32> to vector<16x96xf32>
    %105 = arith.mulf %95, %104 : vector<16x96xf32>
    %c0_46 = arith.constant 0 : index
    %c0_47 = arith.constant 0 : index
    %106 = vector.load %arg9[%c0_46, %c0_47] : memref<1x96xf32, #tpu.memory_space<vmem>>, vector<1x96xf32>
    %107 = vector.broadcast %106 : vector<1x96xf32> to vector<16x96xf32>
    %108 = arith.mulf %105, %107 : vector<16x96xf32>
    %c0_48 = arith.constant 0 : index
    %c0_49 = arith.constant 0 : index
    %109 = vector.load %arg10[%c0_48, %c0_49] : memref<1x96xf32, #tpu.memory_space<vmem>>, vector<1x96xf32>
    %110 = vector.broadcast %109 : vector<1x96xf32> to vector<16x96xf32>
    %111 = arith.addf %108, %110 : vector<16x96xf32>
    %c0_50 = arith.constant 0 : index
    %c0_51 = arith.constant 0 : index
    %112 = vector.load %arg11[%c0_50, %c0_51] : memref<16x96xf32, #tpu.memory_space<vmem>>, vector<16x96xf32>
    tpu.vector_store %arg11[%c0_50, %c0_51], %111 {strides = array<i32>} : memref<16x96xf32, #tpu.memory_space<vmem>>, vector<16x96xf32>,
    return
  }
}

</mosaic_0001>

<llo_original>
// kernel: tpu_custom_call.1
$region0: #{tpu_custom_call.1}
  #allocation0 [shape = 'u32[]', space=smem, size = 0x4, offset = 0x4, fixed_abs, tag = 'smem constant byte address 0x4 - core index']
  #allocation1 [shape = 'u32[144,128]{1,0:T(1,128)}', space=vmem, size = 0x12000, scoped, tag = 'internal scratch']
  #allocation2 [shape = 'f32[40,192]{1,0:T(8,128)}', space=vmem, size = 0xa000, scoped, tag = 'scratch operand']
  %s0 = inlined_call_operand.vmem [shape: f32[2,96], index: 0, kind: input, shape index: {}]
  %s1 = inlined_call_operand.vmem [shape: f32[16,96], index: 1, kind: input, shape index: {}]
  %s2 = inlined_call_operand.vmem [shape: f32[96,192], index: 2, kind: input, shape index: {}]
  %s3 = inlined_call_operand.vmem [shape: f32[1,192], index: 3, kind: input, shape index: {}]
  %s4 = inlined_call_operand.vmem [shape: f32[8,40], index: 4, kind: input, shape index: {}]
  %s5 = inlined_call_operand.vmem [shape: f32[96,384], index: 5, kind: input, shape index: {}]
  %s6 = inlined_call_operand.vmem [shape: f32[1,384], index: 6, kind: input, shape index: {}]
  %s7 = inlined_call_operand.vmem [shape: f32[384,96], index: 7, kind: input, shape index: {}]
  %s8 = inlined_call_operand.vmem [shape: f32[1,96], index: 8, kind: input, shape index: {}]
  %s9 = inlined_call_operand.vmem [shape: f32[1,96], index: 9, kind: input, shape index: {}]
  %s10 = inlined_call_operand.vmem [shape: f32[1,96], index: 10, kind: input, shape index: {}]
  %s11 = inlined_call_operand.hbm [shape: f32[16,96], index: 11, kind: output, shape index: {}]
  %s12 = sld [smem:[#allocation0]]
  $region54: #{tpu_custom_call.1} parent=0
    _
  %s14 = ssub.s32 1, %s12
  %s15 = scalar_select 0, %s14, %s12
  $region1: #{tpu_custom_call.1} parent=0
    #allocation3 [shape = 'u8[8192]{0}', space=vmem, size = 0x2000, scoped, tag = 'output window, operand 0, single buffered']
    #allocation4 [shape = 's32[1]{0}', space=sflag, size = 0x4, scoped, tag = 'scoped memory for tpu_custom_call.1']
    %16 = vsyncpa [#allocation4], 0
    // Predicated region
    $region2: #{tpu_custom_call.1} parent=1 // pred_check
      _
    $region3: #{tpu_custom_call.1} parent=1 // pred_check_branch
      %18 = sbr.rel (0) target = $region5
    $region4: #{tpu_custom_call.1} parent=1 // pred_region
      _
    $region5: #{tpu_custom_call.1} parent=1 // pred_fallthru
      _
    // Predicated region
    $region6: #{tpu_custom_call.1} parent=1 // pred_check
      _
    $region7: #{tpu_custom_call.1} parent=1 // pred_check_branch
      %20 = sbr.rel (0) target = $region9
    $region8: #{tpu_custom_call.1} parent=1 // pred_region
      _
    $region9: #{tpu_custom_call.1} parent=1 // pred_fallthru
      _
    // Predicated region
    $region10: #{tpu_custom_call.1} parent=1 // pred_check
      _
    $region11: #{tpu_custom_call.1} parent=1 // pred_check_branch
      %22 = sbr.rel (0) target = $region13
    $region12: #{tpu_custom_call.1} parent=1 // pred_region
      _
    $region13: #{tpu_custom_call.1} parent=1 // pred_fallthru
      _
    // Predicated region
    $region14: #{tpu_custom_call.1} parent=1 // pred_check
      _
    $region15: #{tpu_custom_call.1} parent=1 // pred_check_branch
      %24 = sbr.rel (0) target = $region17
    $region16: #{tpu_custom_call.1} parent=1 // pred_region
      _
    $region17: #{tpu_custom_call.1} parent=1 // pred_fallthru
      _
    // Predicated region
    $region18: #{tpu_custom_call.1} parent=1 // pred_check
      _
    $region19: #{tpu_custom_call.1} parent=1 // pred_check_branch
      %26 = sbr.rel (0) target = $region21
    $region20: #{tpu_custom_call.1} parent=1 // pred_region
      _
    $region21: #{tpu_custom_call.1} parent=1 // pred_fallthru
      _
    // Predicated region
    $region22: #{tpu_custom_call.1} parent=1 // pred_check
      _
    $region23: #{tpu_custom_call.1} parent=1 // pred_check_branch
      %28 = sbr.rel (0) target = $region25
    $region24: #{tpu_custom_call.1} parent=1 // pred_region
      _
    $region25: #{tpu_custom_call.1} parent=1 // pred_fallthru
      _
    // Predicated region
    $region26: #{tpu_custom_call.1} parent=1 // pred_check
      _
    $region27: #{tpu_custom_call.1} parent=1 // pred_check_branch
      %30 = sbr.rel (0) target = $region29
    $region28: #{tpu_custom_call.1} parent=1 // pred_region
      _
    $region29: #{tpu_custom_call.1} parent=1 // pred_fallthru
      _
    // Predicated region
    $region30: #{tpu_custom_call.1} parent=1 // pred_check
      _
    $region31: #{tpu_custom_call.1} parent=1 // pred_check_branch
      %32 = sbr.rel (0) target = $region33
    $region32: #{tpu_custom_call.1} parent=1 // pred_region
      _
    $region33: #{tpu_custom_call.1} parent=1 // pred_fallthru
      _
    // Predicated region
    $region34: #{tpu_custom_call.1} parent=1 // pred_check
      _
    $region35: #{tpu_custom_call.1} parent=1 // pred_check_branch
      %34 = sbr.rel (0) target = $region37
    $region36: #{tpu_custom_call.1} parent=1 // pred_region
      _
    $region37: #{tpu_custom_call.1} parent=1 // pred_fallthru
      _
    // Predicated region
    $region38: #{tpu_custom_call.1} parent=1 // pred_check
      _
    $region39: #{tpu_custom_call.1} parent=1 // pred_check_branch
      %36 = sbr.rel (0) target = $region41
    $region40: #{tpu_custom_call.1} parent=1 // pred_region
      _
    $region41: #{tpu_custom_call.1} parent=1 // pred_fallthru
      _
    // Predicated region
    $region42: #{tpu_custom_call.1} parent=1 // pred_check
      _
    $region43: #{tpu_custom_call.1} parent=1 // pred_check_branch
      %38 = sbr.rel (0) target = $region45
    $region44: #{tpu_custom_call.1} parent=1 // pred_region
      _
    $region45: #{tpu_custom_call.1} parent=1 // pred_fallthru
      _
    %v39 = vld [vmem:[%s0] sm:$0x3]
    %v40 = vxor.u32 %v39, 2147483648
    %v41 = vmul.f32 %v40, 1.442695
    %v42 = vpow.pop %v41
    %v43 = vadd.f32 %v42, 1.0
    %v44 = vrcp.pop %v43
    %v45 = vmul.f32 1.0, %v44
    %v46 = vmul.f32 %v39, %v45
    %v47 = vld [vmem:[%s2] sm:$0xff]
    %v48 = vld [vmem:[%s2 + $0x8] sm:$0xff]
    %v49 = vld [vmem:[%s2 + $0x10] sm:$0xff]
    %v50 = vld [vmem:[%s2 + $0x18] sm:$0xff]
    %v51 = vld [vmem:[%s2 + $0x20] sm:$0xff]
    %v52 = vld [vmem:[%s2 + $0x28] sm:$0xff]
    %v53 = vld [vmem:[%s2 + $0x30] sm:$0xff]
    %v54 = vld [vmem:[%s2 + $0x38] sm:$0xff]
    %v55 = vld [vmem:[%s2 + $0x40] sm:$0xff]
    %v56 = vld [vmem:[%s2 + $0x48] sm:$0xff]
    %v57 = vld [vmem:[%s2 + $0x50] sm:$0xff]
    %v58 = vld [vmem:[%s2 + $0x58] sm:$0xff]
    %v59 = vld [vmem:[%s2 + $0x60] sm:$0xff]
    %v60 = vld [vmem:[%s2 + $0x68] sm:$0xff]
    %v61 = vld [vmem:[%s2 + $0x70] sm:$0xff]
    %v62 = vld [vmem:[%s2 + $0x78] sm:$0xff]
    %v63 = vld [vmem:[%s2 + $0x80] sm:$0xff]
    %v64 = vld [vmem:[%s2 + $0x88] sm:$0xff]
    %v65 = vld [vmem:[%s2 + $0x90] sm:$0xff]
    %v66 = vld [vmem:[%s2 + $0x98] sm:$0xff]
    %v67 = vld [vmem:[%s2 + $0xa0] sm:$0xff]
    %v68 = vld [vmem:[%s2 + $0xa8] sm:$0xff]
    %v69 = vld [vmem:[%s2 + $0xb0] sm:$0xff]
    %v70 = vld [vmem:[%s2 + $0xb8] sm:$0xff]
    %v71 = vld [vmem:[%s3] sm:$0x3]
    %v73 = vlaneseq
    %v74 = vshrl.u32 %v73, 7
    %v75 = vsub.s32 0, %v74
    %v76 = vrot.slane %v71, %v75
    %v77 = vlaneseq
    %v78 = vshrl.u32 %v77, 7
    %v79 = vsub.s32 1, %v78
    %v80 = vrot.slane %v71, %v79
    %vm83 = vcmask 785408
    %v85 = vsel %vm83, %v46, 0
    %87 = vmatprep.subr.mxu0 %v48
    %88 = vmatpush1.msra.mxu0 %v47
    %89 = vmatprep.subr.mxu0 %v50
    %90 = vmatpush1.msra.mxu0 %v49
    %91 = vmatprep.subr.mxu0 %v52
    %92 = vmatpush1.msra.mxu0 %v51
    %93 = vmatprep.subr.mxu0 %v54
    %94 = vmatpush1.msra.mxu0 %v53
    %95 = vmatprep.subr.mxu0 %v56
    %96 = vmatpush1.msra.mxu0 %v55
    %97 = vmatprep.subr.mxu0 %v58
    %98 = vmatpush1.msra.mxu0 %v57
    %99 = vmatprep.subr.mxu0 %v60
    %100 = vmatpush1.msra.mxu0 %v59
    %101 = vmatprep.subr.mxu0 %v62
    %102 = vmatpush1.msra.mxu0 %v61
    %103 = vmatprep.subr.mxu0 %v64
    %104 = vmatpush1.msra.mxu0 %v63
    %105 = vmatprep.subr.mxu0 %v66
    %106 = vmatpush1.msra.mxu0 %v65
    %107 = vmatprep.subr.mxu0 %v68
    %108 = vmatpush1.msra.mxu0 %v67
    %109 = vmatprep.subr.mxu0 %v70
    %110 = vmatpush1.msra.mxu0 %v69
    %111 = vmatprep.subr.mxu0 0.0
    %112 = vmatpush1.msra.mxu0 0.0
    %113 = vmatprep.subr.mxu0 0.0
    %114 = vmatpush1.msra.mxu0 0.0
    %115 = vmatprep.subr.mxu0 0.0
    %116 = vmatpush1.msra.mxu0 0.0
    %117 = vmatprep.subr.mxu0 0.0
    %118 = vmatpush1.msra.mxu0 0.0
    %119 = vmatprep.subr.mxu0 0.0
    %120 = vmatpush1.msra.mxu0 0.0
    %121 = vmatprep.subr.mxu0 0.0
    %122 = vmatpush1.msra.mxu0 0.0
    %123 = vmatprep.subr.mxu0 0.0
    %124 = vmatpush1.msra.mxu0 0.0
    %125 = vmatprep.subr.mxu0 0.0
    %126 = vmatpush1.msra.mxu0 0.0
    %127 = vmatprep.subr.mxu0 0.0
    %128 = vmatpush1.msra.mxu0 0.0
    %129 = vmatprep.subr.mxu0 0.0
    %130 = vmatpush1.msra.mxu0 0.0
    %131 = vmatprep.subr.mxu0 0.0
    %132 = vmatpush1.msra.mxu0 0.0
    %133 = vmatprep.subr.mxu0 0.0
    %134 = vmatpush1.msra.mxu0 0.0
    %135 = vmatprep.subr.mxu0 0.0
    %136 = vmatpush1.msra.mxu0 0.0
    %137 = vmatprep.subr.mxu0 0.0
    %138 = vmatpush1.msra.mxu0 0.0
    %139 = vmatprep.subr.mxu0 0.0
    %140 = vmatpush1.msra.mxu0 0.0
    %141 = vmatprep.subr.mxu0 0.0
    %142 = vmatpush1.msra.mxu0 0.0
    %143 = vmatprep.subr.mxu0 0.0
    %144 = vmatpush1.msra.mxu0 0.0
    %145 = vmatprep.subr.mxu0 0.0
    %146 = vmatpush1.msra.mxu0 0.0
    %147 = vmatprep.subr.mxu0 0.0
    %148 = vmatpush1.msra.mxu0 0.0
    %149 = vmatprep.subr.mxu0 0.0
    %150 = vmatpush1.msra.mxu0 0.0
    %151 = vmatprep.mubr.f32.mxu0 0.0
    %152 = vmatmul.mubr.f32.gmra.mrb[0].mxu0 %v85
    %v153 = vpop.f32.mrb[0].mxu0
    %v154 = vadd.f32 %v76, %v153
    %v155 = vpop.f32.mrb[0].mxu0
    %v156 = vadd.f32 %v80, %v155
    %157 = vdwg.mxu0
    %v160 = vunpack.c.l.s4 1966171168
    %v161 = vunpack.c.0.s8 %v160
    %v162 = vlaneseq
    %v163 = vshrl.u32 %v162, 7
    %v164 = vsub.s32 %v161, %v163
    %v165 = vrot.slane %v154, %v164
    %v166 = vcombine.high %v165, %v165
    %v168 = vunpack.c.l.s4 1966171168
    %v169 = vunpack.c.0.s8 %v168
    %v170 = vlaneseq
    %v171 = vshrl.u32 %v170, 7
    %v172 = vsub.s32 %v169, %v171
    %v173 = vrot.slane %v165, %v172
    %v175 = vunpack.c.l.s4 1966171168
    %v176 = vunpack.c.0.s8 %v175
    %v177 = vlaneseq
    %v178 = vshrl.u32 %v177, 7
    %v179 = vsub.s32 %v176, %v178
    %v180 = vrot.slane %v166, %v179
    %v181 = vlaneseq
    %v182 = vshrl.u32 %v181, 7
    %v183 = vsub.s32 0, %v182
    %v184 = vrot.slane %v173, %v183
    %v185 = vlaneseq
    %v186 = vshrl.u32 %v185, 7
    %v187 = vsub.s32 0, %v186
    %v188 = vrot.slane %v180, %v187
    %v192 = vcombine.low %v154, %v156
    %v194 = vunpack.c.l.s4 1966171168
    %v195 = vunpack.c.0.s8 %v194
    %v196 = vlaneseq
    %v197 = vshrl.u32 %v196, 7
    %v198 = vsub.s32 %v195, %v197
    %v199 = vrot.slane %v192, %v198
    %v200 = vcombine.high %v199, %v199
    %v202 = vunpack.c.l.s4 1966171168
    %v203 = vunpack.c.0.s8 %v202
    %v204 = vlaneseq
    %v205 = vshrl.u32 %v204, 7
    %v206 = vsub.s32 %v203, %v205
    %v207 = vrot.slane %v199, %v206
    %v209 = vunpack.c.l.s4 1966171168
    %v210 = vunpack.c.0.s8 %v209
    %v211 = vlaneseq
    %v212 = vshrl.u32 %v211, 7
    %v213 = vsub.s32 %v210, %v212
    %v214 = vrot.slane %v200, %v213
    %v215 = vlaneseq
    %v216 = vshrl.u32 %v215, 7
    %v217 = vsub.s32 0, %v216
    %v218 = vrot.slane %v207, %v217
    %v219 = vlaneseq
    %v220 = vshrl.u32 %v219, 7
    %v221 = vsub.s32 1, %v220
    %v222 = vrot.slane %v207, %v221
    %v223 = vlaneseq
    %v224 = vshrl.u32 %v223, 7
    %v225 = vsub.s32 0, %v224
    %v226 = vrot.slane %v214, %v225
    %v227 = vlaneseq
    %v228 = vshrl.u32 %v227, 7
    %v229 = vsub.s32 1, %v228
    %v230 = vrot.slane %v214, %v229
    %v231 = vld [vmem:[%s1] sm:$0xff]
    %v232 = vld [vmem:[%s1 + $0x8] sm:$0xff]
    %v233 = vsel %vm83, %v231, 0.0
    %234 = vadd.xlane.f32.xlu0 %v233
    %v235 = vpop.xlane.xlu0 %234
    %v236 = vsel %vm83, %v232, 0.0
    %237 = vadd.xlane.f32.xlu0 %v236
    %v238 = vpop.xlane.xlu0 %237
    %v239 = vrcp.pop 96.0
    %v240 = vmul.f32 %v235, %v239
    %v241 = vmul.f32 %v238, %v239
    %v242 = vsub.f32 %v231, %v240
    %v243 = vsub.f32 %v232, %v241
    %v244 = vmul.f32 %v242, %v242
    %v245 = vmul.f32 %v243, %v243
    %v246 = vsel %vm83, %v244, 0.0
    %247 = vadd.xlane.f32.xlu0 %v246
    %v248 = vpop.xlane.xlu0 %247
    %v249 = vsel %vm83, %v245, 0.0
    %250 = vadd.xlane.f32.xlu0 %v249
    %v251 = vpop.xlane.xlu0 %250
    %v252 = vmul.f32 %v248, %v239
    %v253 = vmul.f32 %v251, %v239
    %v254 = vadd.f32 %v252, 1e-05
    %v255 = vadd.f32 %v253, 1e-05
    %v256 = vrsqrt.pop %v254
    %v257 = vrsqrt.pop %v255
    %v258 = vmul.f32 %v242, %v256
    %v259 = vmul.f32 %v243, %v257
    %v260 = vadd.f32 %v184, 1.0
    %v261 = vadd.f32 %v188, 1.0
    %v262 = vmul.f32 %v258, %v260
    %v263 = vmul.f32 %v259, %v261
    %264 = vrot.lane.b32.xlu0 %v218, 32
    %v265 = vpop.permute.xlu0 %264
    %266 = vrot.lane.b32.xlu0 %v222, 32
    %v267 = vpop.permute.xlu0 %266
    %268 = vrot.lane.b32.xlu0 %v226, 32
    %v269 = vpop.permute.xlu0 %268
    %270 = vrot.lane.b32.xlu0 %v230, 32
    %v271 = vpop.permute.xlu0 %270
    %vm272 = vcmask 261120
    %v273 = vsel %vm272, %v265, %v267
    %v274 = vsel %vm272, %v269, %v271
    %v277 = vadd.f32 %v262, %v273
    %v278 = vadd.f32 %v263, %v274
    %280 = vrot.lane.b32.xlu0 %v278, 96
    %v281 = vpop.permute.xlu0 %280
    %v283 = vsel %vm83, %v277, %v281
    %v284 = vtanh.pop %v283
    %v285 = vtanh.pop %v281
    %286 = vst [vmem:[#allocation2] sm:$0xff] 1.0
    %vm287 = vcmask 523264
    %288 = vst.msk [vmem:[#allocation2 + $0x8] sm:$0xff] %vm287, 1.0
    %289 = vst [vmem:[#allocation2 + $0x10] sm:$0xff] %v284
    %290 = vst.msk [vmem:[#allocation2 + $0x18] sm:$0xff] %vm287, %v285
    %v291 = vmul.f32 %v284, 2.0
    %v292 = vmul.f32 %v285, 2.0
    %v293 = vmul.f32 %v291, %v284
    %v294 = vmul.f32 %v292, %v285
    %v295 = vsub.f32 %v293, 1.0
    %v296 = vsub.f32 %v294, 1.0
    %297 = vst [vmem:[#allocation2 + $0x20] sm:$0xff] %v295
    %298 = vst.msk [vmem:[#allocation2 + $0x28] sm:$0xff] %vm287, %v296
    %v299 = vmul.f32 %v291, %v295
    %v300 = vmul.f32 %v292, %v296
    %v301 = vsub.f32 %v299, %v284
    %v302 = vsub.f32 %v300, %v285
    %303 = vst [vmem:[#allocation2 + $0x30] sm:$0xff] %v301
    %304 = vst.msk [vmem:[#allocation2 + $0x38] sm:$0xff] %vm287, %v302
    %v305 = vmul.f32 %v291, %v301
    %v306 = vmul.f32 %v292, %v302
    %v307 = vsub.f32 %v305, %v295
    %v308 = vsub.f32 %v306, %v296
    %309 = vst [vmem:[#allocation2 + $0x40] sm:$0xff] %v307
    %310 = vst.msk [vmem:[#allocation2 + $0x48] sm:$0xff] %vm287, %v308
    %v311 = vld [vmem:[%s4] sm:$0xff]
    %v312 = vld [vmem:[#allocation2] sm:$0xff]
    %v313 = vld [vmem:[#allocation2 + $0x8] sm:$0xff]
    %v314 = vld [vmem:[#allocation2 + $0x10] sm:$0xff]
    %v315 = vld [vmem:[#allocation2 + $0x18] sm:$0xff]
    %v316 = vld [vmem:[#allocation2 + $0x20] sm:$0xff]
    %v317 = vld [vmem:[#allocation2 + $0x28] sm:$0xff]
    %v318 = vld [vmem:[#allocation2 + $0x30] sm:$0xff]
    %v319 = vld [vmem:[#allocation2 + $0x38] sm:$0xff]
    %v320 = vld [vmem:[#allocation2 + $0x40] sm:$0xff]
    %v321 = vld [vmem:[#allocation2 + $0x48] sm:$0xff]
    %vm322 = vcmask 326656
    %v324 = vsel %vm322, %v311, 0
    %326 = vmatprep.subr.mxu0 %v313
    %327 = vmatpush1.msra.mxu0 %v312
    %328 = vmatprep.subr.mxu0 %v315
    %329 = vmatpush1.msra.mxu0 %v314
    %330 = vmatprep.subr.mxu0 %v317
    %331 = vmatpush1.msra.mxu0 %v316
    %332 = vmatprep.subr.mxu0 %v319
    %333 = vmatpush1.msra.mxu0 %v318
    %334 = vmatprep.subr.mxu0 %v321
    %335 = vmatpush1.msra.mxu0 %v320
    %336 = vmatprep.subr.mxu0 0.0
    %337 = vmatpush1.msra.mxu0 0.0
    %338 = vmatprep.subr.mxu0 0.0
    %339 = vmatpush1.msra.mxu0 0.0
    %340 = vmatprep.subr.mxu0 0.0
    %341 = vmatpush1.msra.mxu0 0.0
    %342 = vmatprep.subr.mxu0 0.0
    %343 = vmatpush1.msra.mxu0 0.0
    %344 = vmatprep.subr.mxu0 0.0
    %345 = vmatpush1.msra.mxu0 0.0
    %346 = vmatprep.subr.mxu0 0.0
    %347 = vmatpush1.msra.mxu0 0.0
    %348 = vmatprep.subr.mxu0 0.0
    %349 = vmatpush1.msra.mxu0 0.0
    %350 = vmatprep.subr.mxu0 0.0
    %351 = vmatpush1.msra.mxu0 0.0
    %352 = vmatprep.subr.mxu0 0.0
    %353 = vmatpush1.msra.mxu0 0.0
    %354 = vmatprep.subr.mxu0 0.0
    %355 = vmatpush1.msra.mxu0 0.0
    %356 = vmatprep.subr.mxu0 0.0
    %357 = vmatpush1.msra.mxu0 0.0
    %358 = vmatprep.subr.mxu0 0.0
    %359 = vmatpush1.msra.mxu0 0.0
    %360 = vmatprep.subr.mxu0 0.0
    %361 = vmatpush1.msra.mxu0 0.0
    %362 = vmatprep.subr.mxu0 0.0
    %363 = vmatpush1.msra.mxu0 0.0
    %364 = vmatprep.subr.mxu0 0.0
    %365 = vmatpush1.msra.mxu0 0.0
    %366 = vmatprep.subr.mxu0 0.0
    %367 = vmatpush1.msra.mxu0 0.0
    %368 = vmatprep.subr.mxu0 0.0
    %369 = vmatpush1.msra.mxu0 0.0
    %370 = vmatprep.subr.mxu0 0.0
    %371 = vmatpush1.msra.mxu0 0.0
    %372 = vmatprep.subr.mxu0 0.0
    %373 = vmatpush1.msra.mxu0 0.0
    %374 = vmatprep.subr.mxu0 0.0
    %375 = vmatpush1.msra.mxu0 0.0
    %376 = vmatprep.subr.mxu0 0.0
    %377 = vmatpush1.msra.mxu0 0.0
    %378 = vmatprep.subr.mxu0 0.0
    %379 = vmatpush1.msra.mxu0 0.0
    %380 = vmatprep.subr.mxu0 0.0
    %381 = vmatpush1.msra.mxu0 0.0
    %382 = vmatprep.subr.mxu0 0.0
    %383 = vmatpush1.msra.mxu0 0.0
    %384 = vmatprep.subr.mxu0 0.0
    %385 = vmatpush1.msra.mxu0 0.0
    %386 = vmatprep.subr.mxu0 0.0
    %387 = vmatpush1.msra.mxu0 0.0
    %388 = vmatprep.subr.mxu0 0.0
    %389 = vmatpush1.msra.mxu0 0.0
    %390 = vmatprep.mubr.f32.mxu0 0.0
    %391 = vmatmul.mubr.f32.gmra.mrb[0].mxu0 %v324
    %v392 = vpop.f32.mrb[0].mxu0
    %v393 = vadd.f32 0.0, %v392
    %v394 = vpop.f32.mrb[0].mxu0
    %v395 = vadd.f32 0.0, %v394
    %396 = vdwg.mxu0
    %399 = vrot.lane.b32.xlu0 %v393, 32
    %v400 = vpop.permute.xlu0 %399
    %401 = vrot.lane.b32.xlu0 %v395, 32
    %v402 = vpop.permute.xlu0 %401
    %v403 = vsel %vm272, %v400, %v402
    %v405 = vadd.f32 %v393, %v277
    %v406 = vadd.f32 %v403, %v278
    %v407 = vld [vmem:[%s5] sm:$0xff]
    %v408 = vld [vmem:[%s5 + $0x8] sm:$0xff]
    %v409 = vld [vmem:[%s5 + $0x10] sm:$0xff]
    %v410 = vld [vmem:[%s5 + $0x18] sm:$0xff]
    %v411 = vld [vmem:[%s5 + $0x20] sm:$0xff]
    %v412 = vld [vmem:[%s5 + $0x28] sm:$0xff]
    %v413 = vld [vmem:[%s5 + $0x30] sm:$0xff]
    %v414 = vld [vmem:[%s5 + $0x38] sm:$0xff]
    %v415 = vld [vmem:[%s5 + $0x40] sm:$0xff]
    %v416 = vld [vmem:[%s5 + $0x48] sm:$0xff]
    %v417 = vld [vmem:[%s5 + $0x50] sm:$0xff]
    %v418 = vld [vmem:[%s5 + $0x58] sm:$0xff]
    %v419 = vld [vmem:[%s5 + $0x60] sm:$0xff]
    %v420 = vld [vmem:[%s5 + $0x68] sm:$0xff]
    %v421 = vld [vmem:[%s5 + $0x70] sm:$0xff]
    %v422 = vld [vmem:[%s5 + $0x78] sm:$0xff]
    %v423 = vld [vmem:[%s5 + $0x80] sm:$0xff]
    %v424 = vld [vmem:[%s5 + $0x88] sm:$0xff]
    %v425 = vld [vmem:[%s5 + $0x90] sm:$0xff]
    %v426 = vld [vmem:[%s5 + $0x98] sm:$0xff]
    %v427 = vld [vmem:[%s5 + $0xa0] sm:$0xff]
    %v428 = vld [vmem:[%s5 + $0xa8] sm:$0xff]
    %v429 = vld [vmem:[%s5 + $0xb0] sm:$0xff]
    %v430 = vld [vmem:[%s5 + $0xb8] sm:$0xff]
    %v431 = vld [vmem:[%s5 + $0xc0] sm:$0xff]
    %v432 = vld [vmem:[%s5 + $0xc8] sm:$0xff]
    %v433 = vld [vmem:[%s5 + $0xd0] sm:$0xff]
    %v434 = vld [vmem:[%s5 + $0xd8] sm:$0xff]
    %v435 = vld [vmem:[%s5 + $0xe0] sm:$0xff]
    %v436 = vld [vmem:[%s5 + $0xe8] sm:$0xff]
    %v437 = vld [vmem:[%s5 + $0xf0] sm:$0xff]
    %v438 = vld [vmem:[%s5 + $0xf8] sm:$0xff]
    %v439 = vld [vmem:[%s5 + $0x100] sm:$0xff]
    %v440 = vld [vmem:[%s5 + $0x108] sm:$0xff]
    %v441 = vld [vmem:[%s5 + $0x110] sm:$0xff]
    %v442 = vld [vmem:[%s5 + $0x118] sm:$0xff]
    %v443 = vld [vmem:[%s6] sm:$0x7]
    %v445 = vlaneseq
    %v446 = vshrl.u32 %v445, 7
    %v447 = vsub.s32 0, %v446
    %v448 = vrot.slane %v443, %v447
    %v449 = vlaneseq
    %v450 = vshrl.u32 %v449, 7
    %v451 = vsub.s32 1, %v450
    %v452 = vrot.slane %v443, %v451
    %v453 = vlaneseq
    %v454 = vshrl.u32 %v453, 7
    %v455 = vsub.s32 2, %v454
    %v456 = vrot.slane %v443, %v455
    %v461 = vsel %vm83, %v405, 0
    %v464 = vsel %vm83, %v406, 0
    %466 = vmatprep.subr.mxu0 %v408
    %467 = vmatpush1.msra.mxu0 %v407
    %468 = vmatprep.subr.mxu0 %v411
    %469 = vmatpush1.msra.mxu0 %v410
    %470 = vmatprep.subr.mxu0 %v414
    %471 = vmatpush1.msra.mxu0 %v413
    %472 = vmatprep.subr.mxu0 %v417
    %473 = vmatpush1.msra.mxu0 %v416
    %474 = vmatprep.subr.mxu0 %v420
    %475 = vmatpush1.msra.mxu0 %v419
    %476 = vmatprep.subr.mxu0 %v423
    %477 = vmatpush1.msra.mxu0 %v422
    %478 = vmatprep.subr.mxu0 %v426
    %479 = vmatpush1.msra.mxu0 %v425
    %480 = vmatprep.subr.mxu0 %v429
    %481 = vmatpush1.msra.mxu0 %v428
    %482 = vmatprep.subr.mxu0 %v432
    %483 = vmatpush1.msra.mxu0 %v431
    %484 = vmatprep.subr.mxu0 %v435
    %485 = vmatpush1.msra.mxu0 %v434
    %486 = vmatprep.subr.mxu0 %v438
    %487 = vmatpush1.msra.mxu0 %v437
    %488 = vmatprep.subr.mxu0 %v441
    %489 = vmatpush1.msra.mxu0 %v440
    %490 = vmatprep.subr.mxu0 0.0
    %491 = vmatpush1.msra.mxu0 0.0
    %492 = vmatprep.subr.mxu0 0.0
    %493 = vmatpush1.msra.mxu0 0.0
    %494 = vmatprep.subr.mxu0 0.0
    %495 = vmatpush1.msra.mxu0 0.0
    %496 = vmatprep.subr.mxu0 0.0
    %497 = vmatpush1.msra.mxu0 0.0
    %498 = vmatprep.subr.mxu0 0.0
    %499 = vmatpush1.msra.mxu0 0.0
    %500 = vmatprep.subr.mxu0 0.0
    %501 = vmatpush1.msra.mxu0 0.0
    %502 = vmatprep.subr.mxu0 0.0
    %503 = vmatpush1.msra.mxu0 0.0
    %504 = vmatprep.subr.mxu0 0.0
    %505 = vmatpush1.msra.mxu0 0.0
    %506 = vmatprep.subr.mxu0 0.0
    %507 = vmatpush1.msra.mxu0 0.0
    %508 = vmatprep.subr.mxu0 0.0
    %509 = vmatpush1.msra.mxu0 0.0
    %510 = vmatprep.subr.mxu0 0.0
    %511 = vmatpush1.msra.mxu0 0.0
    %512 = vmatprep.subr.mxu0 0.0
    %513 = vmatpush1.msra.mxu0 0.0
    %514 = vmatprep.subr.mxu0 0.0
    %515 = vmatpush1.msra.mxu0 0.0
    %516 = vmatprep.subr.mxu0 0.0
    %517 = vmatpush1.msra.mxu0 0.0
    %518 = vmatprep.subr.mxu0 0.0
    %519 = vmatpush1.msra.mxu0 0.0
    %520 = vmatprep.subr.mxu0 0.0
    %521 = vmatpush1.msra.mxu0 0.0
    %522 = vmatprep.subr.mxu0 0.0
    %523 = vmatpush1.msra.mxu0 0.0
    %524 = vmatprep.subr.mxu0 0.0
    %525 = vmatpush1.msra.mxu0 0.0
    %526 = vmatprep.subr.mxu0 0.0
    %527 = vmatpush1.msra.mxu0 0.0
    %528 = vmatprep.subr.mxu0 0.0
    %529 = vmatpush1.msra.mxu0 0.0
    %530 = vmatprep.mubr.f32.mxu0 0.0
    %531 = vmatmul.mubr.f32.gmra.mrb[0].mxu0 %v461
    %v532 = vpop.f32.mrb[0].mxu0
    %v533 = vadd.f32 %v448, %v532
    %v534 = vpop.f32.mrb[0].mxu0
    %v535 = vadd.f32 %v452, %v534
    %536 = vmatprep.mubr.f32.mxu0 0.0
    %537 = vmatmul.mubr.f32.gmra.mrb[0].mxu0 %v464
    %v538 = vpop.f32.mrb[0].mxu0
    %v539 = vadd.f32 %v448, %v538
    %v540 = vpop.f32.mrb[0].mxu0
    %v541 = vadd.f32 %v452, %v540
    %542 = vdwg.mxu0
    %543 = vmatprep.subr.mxu0 0.0
    %544 = vmatpush1.msra.mxu0 %v409
    %545 = vmatprep.subr.mxu0 0.0
    %546 = vmatpush1.msra.mxu0 %v412
    %547 = vmatprep.subr.mxu0 0.0
    %548 = vmatpush1.msra.mxu0 %v415
    %549 = vmatprep.subr.mxu0 0.0
    %550 = vmatpush1.msra.mxu0 %v418
    %551 = vmatprep.subr.mxu0 0.0
    %552 = vmatpush1.msra.mxu0 %v421
    %553 = vmatprep.subr.mxu0 0.0
    %554 = vmatpush1.msra.mxu0 %v424
    %555 = vmatprep.subr.mxu0 0.0
    %556 = vmatpush1.msra.mxu0 %v427
    %557 = vmatprep.subr.mxu0 0.0
    %558 = vmatpush1.msra.mxu0 %v430
    %559 = vmatprep.subr.mxu0 0.0
    %560 = vmatpush1.msra.mxu0 %v433
    %561 = vmatprep.subr.mxu0 0.0
    %562 = vmatpush1.msra.mxu0 %v436
    %563 = vmatprep.subr.mxu0 0.0
    %564 = vmatpush1.msra.mxu0 %v439
    %565 = vmatprep.subr.mxu0 0.0
    %566 = vmatpush1.msra.mxu0 %v442
    %567 = vmatprep.subr.mxu0 0.0
    %568 = vmatpush1.msra.mxu0 0.0
    %569 = vmatprep.subr.mxu0 0.0
    %570 = vmatpush1.msra.mxu0 0.0
    %571 = vmatprep.subr.mxu0 0.0
    %572 = vmatpush1.msra.mxu0 0.0
    %573 = vmatprep.subr.mxu0 0.0
    %574 = vmatpush1.msra.mxu0 0.0
    %575 = vmatprep.subr.mxu0 0.0
    %576 = vmatpush1.msra.mxu0 0.0
    %577 = vmatprep.subr.mxu0 0.0
    %578 = vmatpush1.msra.mxu0 0.0
    %579 = vmatprep.subr.mxu0 0.0
    %580 = vmatpush1.msra.mxu0 0.0
    %581 = vmatprep.subr.mxu0 0.0
    %582 = vmatpush1.msra.mxu0 0.0
    %583 = vmatprep.subr.mxu0 0.0
    %584 = vmatpush1.msra.mxu0 0.0
    %585 = vmatprep.subr.mxu0 0.0
    %586 = vmatpush1.msra.mxu0 0.0
    %587 = vmatprep.subr.mxu0 0.0
    %588 = vmatpush1.msra.mxu0 0.0
    %589 = vmatprep.subr.mxu0 0.0
    %590 = vmatpush1.msra.mxu0 0.0
    %591 = vmatprep.subr.mxu0 0.0
    %592 = vmatpush1.msra.mxu0 0.0
    %593 = vmatprep.subr.mxu0 0.0
    %594 = vmatpush1.msra.mxu0 0.0
    %595 = vmatprep.subr.mxu0 0.0
    %596 = vmatpush1.msra.mxu0 0.0
    %597 = vmatprep.subr.mxu0 0.0
    %598 = vmatpush1.msra.mxu0 0.0
    %599 = vmatprep.subr.mxu0 0.0
    %600 = vmatpush1.msra.mxu0 0.0
    %601 = vmatprep.subr.mxu0 0.0
    %602 = vmatpush1.msra.mxu0 0.0
    %603 = vmatprep.subr.mxu0 0.0
    %604 = vmatpush1.msra.mxu0 0.0
    %605 = vmatprep.subr.mxu0 0.0
    %606 = vmatpush1.msra.mxu0 0.0
    %607 = vmatprep.mubr.f32.mxu0 0.0
    %608 = vmatmul.mubr.f32.gmra.mrb[0].mxu0 %v461
    %v609 = vpop.f32.mrb[0].mxu0
    %v610 = vadd.f32 %v456, %v609
    %v611 = vpop.f32.mrb[0].mxu0
    %612 = vmatprep.mubr.f32.mxu0 0.0
    %613 = vmatmul.mubr.f32.gmra.mrb[0].mxu0 %v464
    %v614 = vpop.f32.mrb[0].mxu0
    %v615 = vadd.f32 %v456, %v614
    %v616 = vpop.f32.mrb[0].mxu0
    %617 = vdwg.mxu0
    %v618 = vxor.u32 %v533, 2147483648
    %v619 = vxor.u32 %v535, 2147483648
    %v620 = vxor.u32 %v610, 2147483648
    %v621 = vxor.u32 %v539, 2147483648
    %v622 = vxor.u32 %v541, 2147483648
    %v623 = vxor.u32 %v615, 2147483648
    %v624 = vmul.f32 %v618, 1.442695
    %v625 = vpow.pop %v624
    %v626 = vmul.f32 %v619, 1.442695
    %v627 = vpow.pop %v626
    %v628 = vmul.f32 %v620, 1.442695
    %v629 = vpow.pop %v628
    %v630 = vmul.f32 %v621, 1.442695
    %v631 = vpow.pop %v630
    %v632 = vmul.f32 %v622, 1.442695
    %v633 = vpow.pop %v632
    %v634 = vmul.f32 %v623, 1.442695
    %v635 = vpow.pop %v634
    %v636 = vadd.f32 %v625, 1.0
    %v637 = vadd.f32 %v627, 1.0
    %v638 = vadd.f32 %v629, 1.0
    %v639 = vadd.f32 %v631, 1.0
    %v640 = vadd.f32 %v633, 1.0
    %v641 = vadd.f32 %v635, 1.0
    %v642 = vrcp.pop %v636
    %v643 = vmul.f32 1.0, %v642
    %v644 = vrcp.pop %v637
    %v645 = vmul.f32 1.0, %v644
    %v646 = vrcp.pop %v638
    %v647 = vmul.f32 1.0, %v646
    %v648 = vrcp.pop %v639
    %v649 = vmul.f32 1.0, %v648
    %v650 = vrcp.pop %v640
    %v651 = vmul.f32 1.0, %v650
    %v652 = vrcp.pop %v641
    %v653 = vmul.f32 1.0, %v652
    %v654 = vmul.f32 %v533, %v643
    %v655 = vmul.f32 %v535, %v645
    %v656 = vmul.f32 %v610, %v647
    %v657 = vmul.f32 %v539, %v649
    %v658 = vmul.f32 %v541, %v651
    %v659 = vmul.f32 %v615, %v653
    %v660 = vld [vmem:[%s7] sm:$0xff]
    %v661 = vld [vmem:[%s7 + $0x8] sm:$0xff]
    %v662 = vld [vmem:[%s7 + $0x10] sm:$0xff]
    %v663 = vld [vmem:[%s7 + $0x18] sm:$0xff]
    %v664 = vld [vmem:[%s7 + $0x20] sm:$0xff]
    %v665 = vld [vmem:[%s7 + $0x28] sm:$0xff]
    %v666 = vld [vmem:[%s7 + $0x30] sm:$0xff]
    %v667 = vld [vmem:[%s7 + $0x38] sm:$0xff]
    %v668 = vld [vmem:[%s7 + $0x40] sm:$0xff]
    %v669 = vld [vmem:[%s7 + $0x48] sm:$0xff]
    %v670 = vld [vmem:[%s7 + $0x50] sm:$0xff]
    %v671 = vld [vmem:[%s7 + $0x58] sm:$0xff]
    %v672 = vld [vmem:[%s7 + $0x60] sm:$0xff]
    %v673 = vld [vmem:[%s7 + $0x68] sm:$0xff]
    %v674 = vld [vmem:[%s7 + $0x70] sm:$0xff]
    %v675 = vld [vmem:[%s7 + $0x78] sm:$0xff]
    %v676 = vld [vmem:[%s7 + $0x80] sm:$0xff]
    %v677 = vld [vmem:[%s7 + $0x88] sm:$0xff]
    %v678 = vld [vmem:[%s7 + $0x90] sm:$0xff]
    %v679 = vld [vmem:[%s7 + $0x98] sm:$0xff]
    %v680 = vld [vmem:[%s7 + $0xa0] sm:$0xff]
    %v681 = vld [vmem:[%s7 + $0xa8] sm:$0xff]
    %v682 = vld [vmem:[%s7 + $0xb0] sm:$0xff]
    %v683 = vld [vmem:[%s7 + $0xb8] sm:$0xff]
    %v684 = vld [vmem:[%s7 + $0xc0] sm:$0xff]
    %v685 = vld [vmem:[%s7 + $0xc8] sm:$0xff]
    %v686 = vld [vmem:[%s7 + $0xd0] sm:$0xff]
    %v687 = vld [vmem:[%s7 + $0xd8] sm:$0xff]
    %v688 = vld [vmem:[%s7 + $0xe0] sm:$0xff]
    %v689 = vld [vmem:[%s7 + $0xe8] sm:$0xff]
    %v690 = vld [vmem:[%s7 + $0xf0] sm:$0xff]
    %v691 = vld [vmem:[%s7 + $0xf8] sm:$0xff]
    %v692 = vld [vmem:[%s7 + $0x100] sm:$0xff]
    %v693 = vld [vmem:[%s7 + $0x108] sm:$0xff]
    %v694 = vld [vmem:[%s7 + $0x110] sm:$0xff]
    %v695 = vld [vmem:[%s7 + $0x118] sm:$0xff]
    %v696 = vld [vmem:[%s7 + $0x120] sm:$0xff]
    %v697 = vld [vmem:[%s7 + $0x128] sm:$0xff]
    %v698 = vld [vmem:[%s7 + $0x130] sm:$0xff]
    %v699 = vld [vmem:[%s7 + $0x138] sm:$0xff]
    %v700 = vld [vmem:[%s7 + $0x140] sm:$0xff]
    %v701 = vld [vmem:[%s7 + $0x148] sm:$0xff]
    %v702 = vld [vmem:[%s7 + $0x150] sm:$0xff]
    %v703 = vld [vmem:[%s7 + $0x158] sm:$0xff]
    %v704 = vld [vmem:[%s7 + $0x160] sm:$0xff]
    %v705 = vld [vmem:[%s7 + $0x168] sm:$0xff]
    %v706 = vld [vmem:[%s7 + $0x170] sm:$0xff]
    %v707 = vld [vmem:[%s7 + $0x178] sm:$0xff]
    %v708 = vld [vmem:[%s8] sm:$0x1]
    %v710 = vlaneseq
    %v711 = vshrl.u32 %v710, 7
    %v712 = vsub.s32 0, %v711
    %v713 = vrot.slane %v708, %v712
    %715 = vmatprep.subr.mxu0 0.0
    %716 = vmatpush1.msra.mxu0 %v660
    %717 = vmatprep.subr.mxu0 0.0
    %718 = vmatpush1.msra.mxu0 %v661
    %719 = vmatprep.subr.mxu0 0.0
    %720 = vmatpush1.msra.mxu0 %v662
    %721 = vmatprep.subr.mxu0 0.0
    %722 = vmatpush1.msra.mxu0 %v663
    %723 = vmatprep.subr.mxu0 0.0
    %724 = vmatpush1.msra.mxu0 %v664
    %725 = vmatprep.subr.mxu0 0.0
    %726 = vmatpush1.msra.mxu0 %v665
    %727 = vmatprep.subr.mxu0 0.0
    %728 = vmatpush1.msra.mxu0 %v666
    %729 = vmatprep.subr.mxu0 0.0
    %730 = vmatpush1.msra.mxu0 %v667
    %731 = vmatprep.subr.mxu0 0.0
    %732 = vmatpush1.msra.mxu0 %v668
    %733 = vmatprep.subr.mxu0 0.0
    %734 = vmatpush1.msra.mxu0 %v669
    %735 = vmatprep.subr.mxu0 0.0
    %736 = vmatpush1.msra.mxu0 %v670
    %737 = vmatprep.subr.mxu0 0.0
    %738 = vmatpush1.msra.mxu0 %v671
    %739 = vmatprep.subr.mxu0 0.0
    %740 = vmatpush1.msra.mxu0 %v672
    %741 = vmatprep.subr.mxu0 0.0
    %742 = vmatpush1.msra.mxu0 %v673
    %743 = vmatprep.subr.mxu0 0.0
    %744 = vmatpush1.msra.mxu0 %v674
    %745 = vmatprep.subr.mxu0 0.0
    %746 = vmatpush1.msra.mxu0 %v675
    %747 = vmatprep.subr.mxu0 0.0
    %748 = vmatpush1.msra.mxu0 %v676
    %749 = vmatprep.subr.mxu0 0.0
    %750 = vmatpush1.msra.mxu0 %v677
    %751 = vmatprep.subr.mxu0 0.0
    %752 = vmatpush1.msra.mxu0 %v678
    %753 = vmatprep.subr.mxu0 0.0
    %754 = vmatpush1.msra.mxu0 %v679
    %755 = vmatprep.subr.mxu0 0.0
    %756 = vmatpush1.msra.mxu0 %v680
    %757 = vmatprep.subr.mxu0 0.0
    %758 = vmatpush1.msra.mxu0 %v681
    %759 = vmatprep.subr.mxu0 0.0
    %760 = vmatpush1.msra.mxu0 %v682
    %761 = vmatprep.subr.mxu0 0.0
    %762 = vmatpush1.msra.mxu0 %v683
    %763 = vmatprep.subr.mxu0 0.0
    %764 = vmatpush1.msra.mxu0 %v684
    %765 = vmatprep.subr.mxu0 0.0
    %766 = vmatpush1.msra.mxu0 %v685
    %767 = vmatprep.subr.mxu0 0.0
    %768 = vmatpush1.msra.mxu0 %v686
    %769 = vmatprep.subr.mxu0 0.0
    %770 = vmatpush1.msra.mxu0 %v687
    %771 = vmatprep.subr.mxu0 0.0
    %772 = vmatpush1.msra.mxu0 %v688
    %773 = vmatprep.subr.mxu0 0.0
    %774 = vmatpush1.msra.mxu0 %v689
    %775 = vmatprep.subr.mxu0 0.0
    %776 = vmatpush1.msra.mxu0 %v690
    %777 = vmatprep.subr.mxu0 0.0
    %778 = vmatpush1.msra.mxu0 %v691
    %779 = vmatprep.mubr.f32.mxu0 %v655
    %780 = vmatmul.mubr.f32.gmra.mrb[0].mxu0 %v654
    %v781 = vpop.f32.mrb[0].mxu0
    %v782 = vadd.f32 %v713, %v781
    %v783 = vpop.f32.mrb[0].mxu0
    %784 = vmatprep.mubr.f32.mxu0 %v658
    %785 = vmatmul.mubr.f32.gmra.mrb[0].mxu0 %v657
    %v786 = vpop.f32.mrb[0].mxu0
    %v787 = vadd.f32 %v713, %v786
    %v788 = vpop.f32.mrb[0].mxu0
    %789 = vdwg.mxu0
    %790 = vmatprep.subr.mxu0 0.0
    %791 = vmatpush1.msra.mxu0 %v692
    %792 = vmatprep.subr.mxu0 0.0
    %793 = vmatpush1.msra.mxu0 %v693
    %794 = vmatprep.subr.mxu0 0.0
    %795 = vmatpush1.msra.mxu0 %v694
    %796 = vmatprep.subr.mxu0 0.0
    %797 = vmatpush1.msra.mxu0 %v695
    %798 = vmatprep.subr.mxu0 0.0
    %799 = vmatpush1.msra.mxu0 %v696
    %800 = vmatprep.subr.mxu0 0.0
    %801 = vmatpush1.msra.mxu0 %v697
    %802 = vmatprep.subr.mxu0 0.0
    %803 = vmatpush1.msra.mxu0 %v698
    %804 = vmatprep.subr.mxu0 0.0
    %805 = vmatpush1.msra.mxu0 %v699
    %806 = vmatprep.subr.mxu0 0.0
    %807 = vmatpush1.msra.mxu0 %v700
    %808 = vmatprep.subr.mxu0 0.0
    %809 = vmatpush1.msra.mxu0 %v701
    %810 = vmatprep.subr.mxu0 0.0
    %811 = vmatpush1.msra.mxu0 %v702
    %812 = vmatprep.subr.mxu0 0.0
    %813 = vmatpush1.msra.mxu0 %v703
    %814 = vmatprep.subr.mxu0 0.0
    %815 = vmatpush1.msra.mxu0 %v704
    %816 = vmatprep.subr.mxu0 0.0
    %817 = vmatpush1.msra.mxu0 %v705
    %818 = vmatprep.subr.mxu0 0.0
    %819 = vmatpush1.msra.mxu0 %v706
    %820 = vmatprep.subr.mxu0 0.0
    %821 = vmatpush1.msra.mxu0 %v707
    %822 = vmatprep.subr.mxu0 0.0
    %823 = vmatpush1.msra.mxu0 0.0
    %824 = vmatprep.subr.mxu0 0.0
    %825 = vmatpush1.msra.mxu0 0.0
    %826 = vmatprep.subr.mxu0 0.0
    %827 = vmatpush1.msra.mxu0 0.0
    %828 = vmatprep.subr.mxu0 0.0
    %829 = vmatpush1.msra.mxu0 0.0
    %830 = vmatprep.subr.mxu0 0.0
    %831 = vmatpush1.msra.mxu0 0.0
    %832 = vmatprep.subr.mxu0 0.0
    %833 = vmatpush1.msra.mxu0 0.0
    %834 = vmatprep.subr.mxu0 0.0
    %835 = vmatpush1.msra.mxu0 0.0
    %836 = vmatprep.subr.mxu0 0.0
    %837 = vmatpush1.msra.mxu0 0.0
    %838 = vmatprep.subr.mxu0 0.0
    %839 = vmatpush1.msra.mxu0 0.0
    %840 = vmatprep.subr.mxu0 0.0
    %841 = vmatpush1.msra.mxu0 0.0
    %842 = vmatprep.subr.mxu0 0.0
    %843 = vmatpush1.msra.mxu0 0.0
    %844 = vmatprep.subr.mxu0 0.0
    %845 = vmatpush1.msra.mxu0 0.0
    %846 = vmatprep.subr.mxu0 0.0
    %847 = vmatpush1.msra.mxu0 0.0
    %848 = vmatprep.subr.mxu0 0.0
    %849 = vmatpush1.msra.mxu0 0.0
    %850 = vmatprep.subr.mxu0 0.0
    %851 = vmatpush1.msra.mxu0 0.0
    %852 = vmatprep.subr.mxu0 0.0
    %853 = vmatpush1.msra.mxu0 0.0
    %854 = vmatprep.mubr.f32.mxu0 0.0
    %855 = vmatmul.mubr.f32.gmra.mrb[0].mxu0 %v656
    %v856 = vpop.f32.mrb[0].mxu0
    %v857 = vadd.f32 %v782, %v856
    %v858 = vpop.f32.mrb[0].mxu0
    %859 = vmatprep.mubr.f32.mxu0 0.0
    %860 = vmatmul.mubr.f32.gmra.mrb[0].mxu0 %v659
    %v861 = vpop.f32.mrb[0].mxu0
    %v862 = vadd.f32 %v787, %v861
    %v863 = vpop.f32.mrb[0].mxu0
    %864 = vdwg.mxu0
    %v865 = vadd.f32 %v857, %v405
    %v866 = vadd.f32 %v862, %v406
    %v867 = vsel %vm83, %v865, 0.0
    %868 = vadd.xlane.f32.xlu0 %v867
    %v869 = vpop.xlane.xlu0 %868
    %v870 = vsel %vm83, %v866, 0.0
    %871 = vadd.xlane.f32.xlu0 %v870
    %v872 = vpop.xlane.xlu0 %871
    %v873 = vmul.f32 %v869, %v239
    %v874 = vmul.f32 %v872, %v239
    %v875 = vsub.f32 %v865, %v873
    %v876 = vsub.f32 %v866, %v874
    %v877 = vmul.f32 %v875, %v875
    %v878 = vmul.f32 %v876, %v876
    %v879 = vsel %vm83, %v877, 0.0
    %880 = vadd.xlane.f32.xlu0 %v879
    %v881 = vpop.xlane.xlu0 %880
    %v882 = vsel %vm83, %v878, 0.0
    %883 = vadd.xlane.f32.xlu0 %v882
    %v884 = vpop.xlane.xlu0 %883
    %v885 = vmul.f32 %v881, %v239
    %v886 = vmul.f32 %v884, %v239
    %v887 = vadd.f32 %v885, 1e-05
    %v888 = vadd.f32 %v886, 1e-05
    %v889 = vrsqrt.pop %v887
    %v890 = vrsqrt.pop %v888
    %v891 = vmul.f32 %v875, %v889
    %v892 = vmul.f32 %v876, %v890
    %v893 = vld [vmem:[%s9] sm:$0x1]
    %v895 = vlaneseq
    %v896 = vshrl.u32 %v895, 7
    %v897 = vsub.s32 0, %v896
    %v898 = vrot.slane %v893, %v897
    %v900 = vmul.f32 %v891, %v898
    %v901 = vmul.f32 %v892, %v898
    %v902 = vld [vmem:[%s10] sm:$0x1]
    %v904 = vlaneseq
    %v905 = vshrl.u32 %v904, 7
    %v906 = vsub.s32 0, %v905
    %v907 = vrot.slane %v902, %v906
    %v909 = vadd.f32 %v900, %v907
    %v910 = vadd.f32 %v901, %v907
    %911 = vst.msk [vmem:[#allocation3] sm:$0xff] %vm83, %v909
    %912 = vst.msk [vmem:[#allocation3 + $0x8] sm:$0xff] %vm83, %v910
    // Predicated region
    $region46: #{tpu_custom_call.1} parent=1 // pred_check
      _
    $region47: #{tpu_custom_call.1} parent=1 // pred_check_branch
      %914 = sbr.rel (0) target = $region49
    $region48: #{tpu_custom_call.1} parent=1 // pred_region
      %s916 = ssub.s32 256, 256
      %917 = vsyncadd [#allocation4], %s916
      %s918 = sshll.u32 [#allocation3], 4
      %s919 = int_to_ptr.vmem [resolvable:$true] %s918
      %924 = dma.vmem_to_hbm [thread:$0]  %s919, 256, %s11, [#allocation4], 128, 128, 8
    $region49: #{tpu_custom_call.1} parent=1 // pred_fallthru
      _
    // Predicated region
    $region50: #{tpu_custom_call.1} parent=1 // pred_check
      _
    $region51: #{tpu_custom_call.1} parent=1 // pred_check_branch
      %926 = sbr.rel (0) target = $region53
    $region52: #{tpu_custom_call.1} parent=1 // pred_region
      %927 = dma.done [#allocation4], 256
    $region53: #{tpu_custom_call.1} parent=1 // pred_fallthru
      _
    %928 = vsyncpa [#allocation4], 1

</llo_original>
